<compile_context>
chip_gen: v6e
topology: v6e:2x2x1
jax: 0.10.0
libtpu: 0.0.40
codegen_flags: <defaults>
</compile_context>

<pallas_src>
import jax
import jax.numpy as jnp
from jax.experimental import pallas as pl
from jax.experimental.pallas import tpu as pltpu

POLYNOMIAL_ORDER = 3
LANES = 128          # vreg lane width
TILE_ROWS = 512      # per-grid-step block: (512, 128) f32 = 256 KiB


def _poly_kernel(a_ref, x_ref, o_ref):
    # a_ref: SMEM (order+1,) float32 coefficients (scalar prefetch)
    # x_ref: VMEM (tile_rows, 128) float32 lane-dense x values
    # o_ref: VMEM (tile_rows, 128) float32 output
    x = x_ref[...]
    # fx = a0 (broadcast once); xp starts at x (== ones*x, bit-identical).
    fx = jnp.full(x.shape, a_ref[0], dtype=x.dtype)
    xp = x
    # Same term/accumulation order as the PyTorch loop.
    for i in range(1, POLYNOMIAL_ORDER + 1):
        fx = fx + a_ref[i] * xp
        if i < POLYNOMIAL_ORDER:
            xp = xp * x
    o_ref[...] = fx


def poly_regression_1d(X, a):
    """Forward pass of PolyRegression1D.

    X: (N, size_in) or (size_in,) float32
    a: (order + 1,) float32 polynomial coefficients
    returns: (N, 1) float32 for 2-D input, (1,) for 1-D input.
    """
    one_d = X.ndim == 1
    if one_d:
        x_flat = X[0].reshape(1).astype(jnp.float32)
    else:
        # Single layout-plumbing step: take column 0 as a flat, dense vector.
        x_flat = X[:, 0].astype(jnp.float32)

    n = x_flat.shape[0]

    # Lane-dense padding: rows * 128 elements, rows a multiple of 8 sublanes
    # and of the tile height so the grid divides evenly.
    rows = -(-n // LANES)               # ceil(n / 128)
    rows = -(-rows // 8) * 8            # multiple of 8 sublanes
    tile_rows = min(TILE_ROWS, rows)
    rows = -(-rows // tile_rows) * tile_rows
    padded_n = rows * LANES

    x_pad = jnp.pad(x_flat, (0, padded_n - n))
    x2d = x_pad.reshape(rows, LANES)

    grid = (rows // tile_rows,)
    block = (tile_rows, LANES)
    block_bytes = tile_rows * LANES * 4
    # Double-buffered input + output blocks, plus generous headroom; explicit
    # so the same kernel fits v7x's 64 MiB VMEM without retuning.
    vmem_limit = max(4 * 1024 * 1024, 8 * block_bytes)

    out2d = pl.pallas_call(
        _poly_kernel,
        out_shape=jax.ShapeDtypeStruct((rows, LANES), jnp.float32),
        grid_spec=pltpu.PrefetchScalarGridSpec(
            num_scalar_prefetch=1,  # coefficients -> SMEM
            grid=grid,
            in_specs=[pl.BlockSpec(block, lambda i, a_s: (i, 0))],
            out_specs=pl.BlockSpec(block, lambda i, a_s: (i, 0)),
        ),
        compiler_params=pltpu.CompilerParams(
            dimension_semantics=("parallel",),
            vmem_limit_bytes=vmem_limit,
        ),
        cost_estimate=pl.CostEstimate(
            flops=7 * padded_n, transcendentals=0, bytes_accessed=8 * padded_n
        ),
    )(a.astype(jnp.float32), x2d)

    # Drop padding and restore the module's output shape.
    out_flat = out2d.reshape(padded_n)[:n]
    if one_d:
        return out_flat.reshape(1)
    return out_flat.reshape(n, 1)


def _reference(X, a):
    one_d = X.ndim == 1
    x = X[0].reshape(1) if one_d else X[:, 0:1]
    xp = jnp.ones_like(x)
    fx = a[0] * jnp.ones_like(x)
    for i in range(1, POLYNOMIAL_ORDER + 1):
        xp = xp * x
        fx = fx + a[i] * xp
    return fx


if __name__ == "__main__":
    key = jax.random.PRNGKey(0)
    k1, k2 = jax.random.split(key)

    # Deterministic, non-trivial coefficients (module init is zeros, which is
    # degenerate; fixed in-script for a meaningful check).
    a = jnp.array([0.5, -1.0, 0.25, 2.0], dtype=jnp.float32)

    # Small shape consistent with the module: batch N=8, size_in=4.
    N, size_in = 8, 4
    X = jax.random.normal(k1, (N, size_in), dtype=jnp.float32)
    out = jax.block_until_ready(poly_regression_1d(X, a))
    ref = _reference(X, a)
    assert out.shape == (N, 1), out.shape
    assert jnp.allclose(out, ref, atol=1e-6, rtol=1e-6)

    # Exercise padding/slicing with a batch that is not a lane multiple.
    N2 = 300
    X2 = jax.random.normal(k2, (N2, size_in), dtype=jnp.float32)
    out2 = jax.block_until_ready(poly_regression_1d(X2, a))
    ref2 = _reference(X2, a)
    assert out2.shape == (N2, 1), out2.shape
    assert jnp.allclose(out2, ref2, atol=1e-6, rtol=1e-6)

    # Exercise the 1-D input path.
    x1d = X[0]
    out1d = jax.block_until_ready(poly_regression_1d(x1d, a))
    ref1d = _reference(x1d, a)
    assert out1d.shape == (1,), out1d.shape
    assert jnp.allclose(out1d, ref1d, atol=1e-6, rtol=1e-6)

    print("KERNEL_OK")
</pallas_src>

<mosaic_0001>
module attributes {stable_mosaic.version = 11 : i64} {
  func.func @_poly_kernel(%arg0: i32, %arg1: memref<4xf32, #tpu.memory_space<smem>>, %arg2: memref<8x128xf32, #tpu.memory_space<vmem>>, %arg3: memref<8x128xf32, #tpu.memory_space<vmem>>) attributes {dimension_semantics = [#tpu.dimension_semantics<parallel>], iteration_bounds = array<i64: 1>, scalar_prefetch = 1 : i64, scratch_operands = 0 : i64, tpu.core_type = #tpu.core_type<tc>, window_params = [{transform_indices = @transform_0, window_bounds = array<i64: 8, 128>}, {transform_indices = @transform_1, window_bounds = array<i64: 8, 128>}]} {
    %c0 = arith.constant 0 : index
    %c0_0 = arith.constant 0 : index
    %0 = vector.load %arg2[%c0, %c0_0] : memref<8x128xf32, #tpu.memory_space<vmem>>, vector<8x128xf32>
    %c0_1 = arith.constant 0 : index
    %1 = memref.load %arg1[%c0_1] : memref<4xf32, #tpu.memory_space<smem>>
    %2 = vector.broadcast %1 : f32 to vector<8x128xf32>
    %c1 = arith.constant 1 : index
    %3 = memref.load %arg1[%c1] : memref<4xf32, #tpu.memory_space<smem>>
    %4 = vector.broadcast %3 : f32 to vector<8x128xf32>
    %5 = arith.mulf %4, %0 : vector<8x128xf32>
    %6 = arith.addf %2, %5 : vector<8x128xf32>
    %7 = arith.mulf %0, %0 : vector<8x128xf32>
    %c2 = arith.constant 2 : index
    %8 = memref.load %arg1[%c2] : memref<4xf32, #tpu.memory_space<smem>>
    %9 = vector.broadcast %8 : f32 to vector<8x128xf32>
    %10 = arith.mulf %9, %7 : vector<8x128xf32>
    %11 = arith.addf %6, %10 : vector<8x128xf32>
    %12 = arith.mulf %7, %0 : vector<8x128xf32>
    %c3 = arith.constant 3 : index
    %13 = memref.load %arg1[%c3] : memref<4xf32, #tpu.memory_space<smem>>
    %14 = vector.broadcast %13 : f32 to vector<8x128xf32>
    %15 = arith.mulf %14, %12 : vector<8x128xf32>
    %16 = arith.addf %11, %15 : vector<8x128xf32>
    %c0_2 = arith.constant 0 : index
    %c0_3 = arith.constant 0 : index
    %17 = vector.load %arg3[%c0_2, %c0_3] : memref<8x128xf32, #tpu.memory_space<vmem>>, vector<8x128xf32>
    tpu.vector_store %arg3[%c0_2, %c0_3], %16 {strides = array<i32>} : memref<8x128xf32, #tpu.memory_space<vmem>>, vector<8x128xf32>,
    return
  }
  func.func @transform_0(%arg0: i32, %arg1: memref<4xf32, #tpu.memory_space<smem>>) -> (i32, i32) {
    %c0_i32 = arith.constant 0 : i32
    %c0_i32_0 = arith.constant 0 : i32
    return %arg0, %c0_i32 : i32, i32
  }
  func.func @transform_1(%arg0: i32, %arg1: memref<4xf32, #tpu.memory_space<smem>>) -> (i32, i32) {
    %c0_i32 = arith.constant 0 : i32
    %c0_i32_0 = arith.constant 0 : i32
    return %arg0, %c0_i32 : i32, i32
  }
}

</mosaic_0001>

<llo_original>
// kernel: tpu_custom_call.1
$region0: #{tpu_custom_call.1}
  #allocation0 [shape = 'u32[]', space=smem, size = 0x4, offset = 0x4, fixed_abs, tag = 'smem constant byte address 0x4 - core index']
  #allocation1 [shape = 'u32[144,128]{1,0:T(1,128)}', space=vmem, size = 0x12000, scoped, tag = 'internal scratch']
  #allocation2 [shape = 's32[1]{0}', space=sflag, size = 0x4, scoped, tag = 'scoped memory for tpu_custom_call.1']
  #allocation3 [shape = 'u8[512]{0}', space=smem, size = 0x200, scoped, tag = 'prefetched SMEM operand 0']
  %s0 = inlined_call_operand.hbm [shape: f32[4], index: 0, kind: input, shape index: {}]
  %s1 = inlined_call_operand.hbm [shape: f32[8,128], index: 1, kind: input, shape index: {}]
  %s2 = inlined_call_operand.hbm [shape: f32[8,128], index: 2, kind: output, shape index: {}]
  %s3 = sld [smem:[#allocation0]]
  $region18: #{tpu_custom_call.1} parent=0
    _
  %s5 = ssub.s32 1, %s3
  %s6 = scalar_select 0, %s5, %s3
  %8 = dma.hbm_to_smem %s0, 16, [#allocation3], [#allocation2]
  %9 = dma.done [#allocation2], 16
  %10 = sfence
  $region1: #{tpu_custom_call.1} parent=0
    #allocation4 [shape = 'u8[4096]{0}', space=vmem, size = 0x1000, scoped, tag = 'input window, operand 1, single buffered']
    #allocation5 [shape = 's32[1]{0}', space=sflag, size = 0x4, scoped, tag = 'scoped memory for tpu_custom_call.1']
    #allocation6 [shape = 's32[1]{0}', space=sflag, size = 0x4, scoped, tag = 'scoped memory for tpu_custom_call.1']
    #allocation7 [shape = 'u8[4096]{0}', space=vmem, size = 0x1000, scoped, tag = 'output window, operand 0, single buffered']
    %11 = vsyncpa [#allocation5], 0
    %12 = vsyncpa [#allocation6], 0
    // Predicated region
    $region2: #{tpu_custom_call.1} parent=1 // pred_check
      _
    $region3: #{tpu_custom_call.1} parent=1 // pred_check_branch
      %14 = sbr.rel (0) target = $region5
    $region4: #{tpu_custom_call.1} parent=1 // pred_region
      %s16 = ssub.s32 128, 128
      %17 = vsyncadd [#allocation5], %s16
      %s19 = sshll.u32 [#allocation4], 4
      %s20 = int_to_ptr.vmem [resolvable:$true] %s19
      %22 = dma.hbm_to_vmem [thread:$0]  %s1, 128, %s20, [#allocation5]
    $region5: #{tpu_custom_call.1} parent=1 // pred_fallthru
      _
    // Predicated region
    $region6: #{tpu_custom_call.1} parent=1 // pred_check
      _
    $region7: #{tpu_custom_call.1} parent=1 // pred_check_branch
      %24 = sbr.rel (0) target = $region9
    $region8: #{tpu_custom_call.1} parent=1 // pred_region
      %25 = dma.done [#allocation5], 128
    $region9: #{tpu_custom_call.1} parent=1 // pred_fallthru
      _
    %v26 = vld [vmem:[#allocation4] sm:$0xff]
    %s27 = sld [smem:[#allocation3]]
    %v28 = vstv %s27
    %s29 = sld [smem:[#allocation3 + $0x1]]
    %v30 = vstv %s29
    %v31 = vmul.f32 %v30, %v26
    %v32 = vadd.f32 %v28, %v31
    %v33 = vmul.f32 %v26, %v26
    %s34 = sld [smem:[#allocation3 + $0x2]]
    %v35 = vstv %s34
    %v36 = vmul.f32 %v35, %v33
    %v37 = vadd.f32 %v32, %v36
    %v38 = vmul.f32 %v33, %v26
    %s39 = sld [smem:[#allocation3 + $0x3]]
    %v40 = vstv %s39
    %v41 = vmul.f32 %v40, %v38
    %v42 = vadd.f32 %v37, %v41
    %43 = vst [vmem:[#allocation7] sm:$0xff] %v42
    // Predicated region
    $region10: #{tpu_custom_call.1} parent=1 // pred_check
      _
    $region11: #{tpu_custom_call.1} parent=1 // pred_check_branch
      %45 = sbr.rel (0) target = $region13
    $region12: #{tpu_custom_call.1} parent=1 // pred_region
      %s47 = ssub.s32 128, 128
      %48 = vsyncadd [#allocation6], %s47
      %s50 = sshll.u32 [#allocation7], 4
      %s51 = int_to_ptr.vmem [resolvable:$true] %s50
      %53 = dma.vmem_to_hbm [thread:$0]  %s51, 128, %s2, [#allocation6]
    $region13: #{tpu_custom_call.1} parent=1 // pred_fallthru
      _
    // Predicated region
    $region14: #{tpu_custom_call.1} parent=1 // pred_check
      _
    $region15: #{tpu_custom_call.1} parent=1 // pred_check_branch
      %55 = sbr.rel (0) target = $region17
    $region16: #{tpu_custom_call.1} parent=1 // pred_region
      %56 = dma.done [#allocation6], 128
    $region17: #{tpu_custom_call.1} parent=1 // pred_fallthru
      _
    %57 = vsyncpa [#allocation5], 1
    %58 = vsyncpa [#allocation6], 1

</llo_original>
